<compile_context>
chip_gen: v5e
topology: v5e:2x2
jax: 0.10.0
libtpu: 0.0.40
codegen_flags: <defaults>
</compile_context>

<pallas_src>
import functools
import jax
import jax.numpy as jnp
from jax.experimental import pallas as pl
from jax.experimental.pallas import tpu as pltpu


# ----------------------------- Pallas kernels -----------------------------

def _gn_proj_in_kernel(x_ref, g_ref, b_ref, w_ref, pb_ref, o_ref, *, groups, eps):
    """GroupNorm (per-batch) + 1x1 conv proj_in, producing (HW, inner) tokens."""
    x = x_ref[0]                                            # (C, HW) f32
    C, HW = x.shape
    cg = C // groups
    # Group statistics over (Cg * HW); identity reshape when Cg == 1.
    xg = x.reshape(groups, cg * HW)
    mean = jnp.mean(xg, axis=-1, keepdims=True)
    var = jnp.mean((xg - mean) ** 2, axis=-1, keepdims=True)
    xn = ((xg - mean) * jax.lax.rsqrt(var + eps)).reshape(C, HW)
    xn = xn * g_ref[...] + b_ref[...]                       # per-channel affine, (C,1) bcast
    # tokens (HW, inner) = xn^T @ W  -- contract the channel axis of both operands,
    # which folds the NCHW->NHWC permute into the matmul.
    tok = jax.lax.dot_general(
        xn.astype(jnp.bfloat16), w_ref[...],
        dimension_numbers=(((0,), (0,)), ((), ())),
        preferred_element_type=jnp.float32)                 # (HW, inner) f32
    o_ref[0] = (tok + pb_ref[...]).astype(o_ref.dtype)


def _attn_self_kernel(hs_ref, g_ref, b_ref, wqkv_ref, wo_ref, bo_ref, o_ref,
                      *, heads, eps):
    """LayerNorm + fused QKV + multi-head self-attention + out-proj + residual."""
    hs = hs_ref[0]                                          # (S, D) f32
    S, D = hs.shape
    dh = D // heads
    scale = float(dh) ** -0.5

    mean = jnp.mean(hs, axis=-1, keepdims=True)
    var = jnp.mean((hs - mean) ** 2, axis=-1, keepdims=True)
    n = ((hs - mean) * jax.lax.rsqrt(var + eps)) * g_ref[...] + b_ref[...]

    qkv = jnp.dot(n.astype(jnp.bfloat16), wqkv_ref[...],
                  preferred_element_type=jnp.float32)       # (S, 3D) f32

    out = hs + bo_ref[...]                                  # residual + out-proj bias
    for h in range(heads):                                  # heads stay lane-packed; static slices
        q_h = qkv[:, h * dh:(h + 1) * dh].astype(jnp.bfloat16)
        k_h = qkv[:, D + h * dh:D + (h + 1) * dh].astype(jnp.bfloat16)
        v_h = qkv[:, 2 * D + h * dh:2 * D + (h + 1) * dh].astype(jnp.bfloat16)
        s = jax.lax.dot_general(q_h, k_h, (((1,), (1,)), ((), ())),
                                preferred_element_type=jnp.float32) * scale
        m = jnp.max(s, axis=-1, keepdims=True)
        p = jnp.exp(s - m)
        p = p * pl.reciprocal(jnp.sum(p, axis=-1, keepdims=True), approx=True)
        o_h = jnp.dot(p.astype(jnp.bfloat16), v_h,
                      preferred_element_type=jnp.float32)   # (S, dh)
        out = out + jnp.dot(o_h.astype(jnp.bfloat16), wo_ref[h * dh:(h + 1) * dh, :],
                            preferred_element_type=jnp.float32)
    o_ref[0] = out.astype(o_ref.dtype)


def _attn_cross_kernel(hs_ref, ctx_ref, g_ref, b_ref, wq_ref, wkv_ref, wo_ref, bo_ref,
                       o_ref, *, heads, eps):
    """LayerNorm + Q / fused-KV + multi-head cross-attention + out-proj + residual."""
    hs = hs_ref[0]                                          # (S, D) f32
    ctx = ctx_ref[0]                                        # (Sk, Dc) f32
    S, D = hs.shape
    dh = D // heads
    scale = float(dh) ** -0.5

    mean = jnp.mean(hs, axis=-1, keepdims=True)
    var = jnp.mean((hs - mean) ** 2, axis=-1, keepdims=True)
    n = ((hs - mean) * jax.lax.rsqrt(var + eps)) * g_ref[...] + b_ref[...]

    q = jnp.dot(n.astype(jnp.bfloat16), wq_ref[...],
                preferred_element_type=jnp.float32)         # (S, D)
    kv = jnp.dot(ctx.astype(jnp.bfloat16), wkv_ref[...],
                 preferred_element_type=jnp.float32)        # (Sk, 2D)

    out = hs + bo_ref[...]
    for h in range(heads):
        q_h = q[:, h * dh:(h + 1) * dh].astype(jnp.bfloat16)
        k_h = kv[:, h * dh:(h + 1) * dh].astype(jnp.bfloat16)
        v_h = kv[:, D + h * dh:D + (h + 1) * dh].astype(jnp.bfloat16)
        s = jax.lax.dot_general(q_h, k_h, (((1,), (1,)), ((), ())),
                                preferred_element_type=jnp.float32) * scale
        m = jnp.max(s, axis=-1, keepdims=True)
        p = jnp.exp(s - m)
        p = p * pl.reciprocal(jnp.sum(p, axis=-1, keepdims=True), approx=True)
        o_h = jnp.dot(p.astype(jnp.bfloat16), v_h, preferred_element_type=jnp.float32)
        out = out + jnp.dot(o_h.astype(jnp.bfloat16), wo_ref[h * dh:(h + 1) * dh, :],
                            preferred_element_type=jnp.float32)
    o_ref[0] = out.astype(o_ref.dtype)


def _ff_kernel(hs_ref, g_ref, b_ref, w1_ref, b1_ref, w2_ref, b2_ref, o_ref, *, eps):
    """LayerNorm + GEGLU + second FF matmul + residual, per token tile."""
    hs = hs_ref[...]                                        # (tm, D) f32
    mean = jnp.mean(hs, axis=-1, keepdims=True)
    var = jnp.mean((hs - mean) ** 2, axis=-1, keepdims=True)
    n = ((hs - mean) * jax.lax.rsqrt(var + eps)) * g_ref[...] + b_ref[...]

    h = jnp.dot(n.astype(jnp.bfloat16), w1_ref[...],
                preferred_element_type=jnp.float32) + b1_ref[...]   # (tm, 2F)
    nf = h.shape[-1] // 2
    val = h[:, :nf]
    gate = h[:, nf:]
    # F.gelu default is the exact (erf) form; gate math stays f32.
    act = val * jax.nn.gelu(gate, approximate=False)

    out = jnp.dot(act.astype(jnp.bfloat16), w2_ref[...],
                  preferred_element_type=jnp.float32) + b2_ref[...]
    o_ref[...] = (out + hs).astype(o_ref.dtype)


def _proj_out_kernel(hs_ref, res_ref, w_ref, b_ref, o_ref):
    """1x1 conv proj_out + NHWC->NCHW (folded into NT matmul) + residual add."""
    hs = hs_ref[0].astype(jnp.bfloat16)                     # (HW, inner)
    # out (C, HW) = W (C, inner) @ hs^T  -- lane-dense (HW multiple of 128) output.
    out = jax.lax.dot_general(w_ref[...], hs, (((1,), (1,)), ((), ())),
                              preferred_element_type=jnp.float32)
    o_ref[0] = (out + b_ref[...] + res_ref[0]).astype(o_ref.dtype)


# ----------------------------- wrappers -----------------------------

def _parallel(n):
    return pltpu.CompilerParams(dimension_semantics=("parallel",) * n)


def _pick_tm(m):
    for tm in (512, 256, 128):
        if m % tm == 0 and m // tm >= 2:
            return tm
    return m


def gn_proj_in(x_bcn, gn_g, gn_b, w, b, *, groups=32, eps=1e-6):
    B, C, HW = x_bcn.shape
    inner = w.shape[1]
    return pl.pallas_call(
        functools.partial(_gn_proj_in_kernel, groups=groups, eps=eps),
        out_shape=jax.ShapeDtypeStruct((B, HW, inner), x_bcn.dtype),
        grid=(B,),
        in_specs=[pl.BlockSpec((1, C, HW), lambda bi: (bi, 0, 0)),
                  pl.BlockSpec((C, 1), lambda bi: (0, 0)),
                  pl.BlockSpec((C, 1), lambda bi: (0, 0)),
                  pl.BlockSpec((C, inner), lambda bi: (0, 0)),
                  pl.BlockSpec((1, inner), lambda bi: (0, 0))],
        out_specs=pl.BlockSpec((1, HW, inner), lambda bi: (bi, 0, 0)),
        compiler_params=_parallel(1),
    )(x_bcn, gn_g, gn_b, w, b)


def fused_self_attention(hs, g, b, wqkv, wo, bo, *, heads, eps=1e-5):
    B, S, D = hs.shape
    return pl.pallas_call(
        functools.partial(_attn_self_kernel, heads=heads, eps=eps),
        out_shape=jax.ShapeDtypeStruct((B, S, D), hs.dtype),
        grid=(B,),
        in_specs=[pl.BlockSpec((1, S, D), lambda bi: (bi, 0, 0)),
                  pl.BlockSpec((1, D), lambda bi: (0, 0)),
                  pl.BlockSpec((1, D), lambda bi: (0, 0)),
                  pl.BlockSpec((D, 3 * D), lambda bi: (0, 0)),
                  pl.BlockSpec((D, D), lambda bi: (0, 0)),
                  pl.BlockSpec((1, D), lambda bi: (0, 0))],
        out_specs=pl.BlockSpec((1, S, D), lambda bi: (bi, 0, 0)),
        compiler_params=_parallel(1),
    )(hs, g, b, wqkv, wo, bo)


def fused_cross_attention(hs, ctx, g, b, wq, wkv, wo, bo, *, heads, eps=1e-5):
    B, S, D = hs.shape
    Sk, Dc = ctx.shape[1], ctx.shape[2]
    return pl.pallas_call(
        functools.partial(_attn_cross_kernel, heads=heads, eps=eps),
        out_shape=jax.ShapeDtypeStruct((B, S, D), hs.dtype),
        grid=(B,),
        in_specs=[pl.BlockSpec((1, S, D), lambda bi: (bi, 0, 0)),
                  pl.BlockSpec((1, Sk, Dc), lambda bi: (bi, 0, 0)),
                  pl.BlockSpec((1, D), lambda bi: (0, 0)),
                  pl.BlockSpec((1, D), lambda bi: (0, 0)),
                  pl.BlockSpec((D, D), lambda bi: (0, 0)),
                  pl.BlockSpec((Dc, 2 * D), lambda bi: (0, 0)),
                  pl.BlockSpec((D, D), lambda bi: (0, 0)),
                  pl.BlockSpec((1, D), lambda bi: (0, 0))],
        out_specs=pl.BlockSpec((1, S, D), lambda bi: (bi, 0, 0)),
        compiler_params=_parallel(1),
    )(hs, ctx, g, b, wq, wkv, wo, bo)


def fused_ff(hs_md, g, b, w1, b1, w2, b2, *, eps=1e-5):
    M, D = hs_md.shape
    F2 = w1.shape[1]
    Fi = w2.shape[0]
    tm = _pick_tm(M)
    return pl.pallas_call(
        functools.partial(_ff_kernel, eps=eps),
        out_shape=jax.ShapeDtypeStruct((M, D), hs_md.dtype),
        grid=(M // tm,),
        in_specs=[pl.BlockSpec((tm, D), lambda i: (i, 0)),
                  pl.BlockSpec((1, D), lambda i: (0, 0)),
                  pl.BlockSpec((1, D), lambda i: (0, 0)),
                  pl.BlockSpec((D, F2), lambda i: (0, 0)),
                  pl.BlockSpec((1, F2), lambda i: (0, 0)),
                  pl.BlockSpec((Fi, D), lambda i: (0, 0)),
                  pl.BlockSpec((1, D), lambda i: (0, 0))],
        out_specs=pl.BlockSpec((tm, D), lambda i: (i, 0)),
        compiler_params=_parallel(1),
    )(hs_md, g, b, w1, b1, w2, b2)


def proj_out_residual(hs, res_bcn, w, b):
    B, S, D = hs.shape
    C = w.shape[0]
    return pl.pallas_call(
        _proj_out_kernel,
        out_shape=jax.ShapeDtypeStruct((B, C, S), res_bcn.dtype),
        grid=(B,),
        in_specs=[pl.BlockSpec((1, S, D), lambda bi: (bi, 0, 0)),
                  pl.BlockSpec((1, C, S), lambda bi: (bi, 0, 0)),
                  pl.BlockSpec((C, D), lambda bi: (0, 0)),
                  pl.BlockSpec((C, 1), lambda bi: (0, 0))],
        out_specs=pl.BlockSpec((1, C, S), lambda bi: (bi, 0, 0)),
        compiler_params=_parallel(1),
    )(hs, res_bcn, w, b)


# ----------------------------- model glue -----------------------------

def transformer2d_forward(x_nchw, encoder_hidden_states, p, heads):
    B, C, H, W = x_nchw.shape
    HW = H * W
    bf16 = jnp.bfloat16
    x3 = x_nchw.reshape(B, C, HW)                           # free reshape, stays NCHW-packed

    # GroupNorm(32, eps=1e-6) + proj_in (1x1 conv)
    hs = gn_proj_in(x3,
                    p["gn_g"].reshape(C, 1), p["gn_b"].reshape(C, 1),
                    p["proj_in_w"].astype(bf16), p["proj_in_b"].reshape(1, -1),
                    groups=32, eps=1e-6)                    # (B, HW, inner)
    inner = hs.shape[-1]

    # BasicTransformerBlock
    wqkv = jnp.concatenate([p["a1_wq"], p["a1_wk"], p["a1_wv"]], axis=1).astype(bf16)
    hs = fused_self_attention(hs,
                              p["ln1_g"].reshape(1, -1), p["ln1_b"].reshape(1, -1),
                              wqkv, p["a1_wo"].astype(bf16), p["a1_bo"].reshape(1, -1),
                              heads=heads)

    wkv = jnp.concatenate([p["a2_wk"], p["a2_wv"]], axis=1).astype(bf16)
    hs = fused_cross_attention(hs, encoder_hidden_states,
                               p["ln2_g"].reshape(1, -1), p["ln2_b"].reshape(1, -1),
                               p["a2_wq"].astype(bf16), wkv,
                               p["a2_wo"].astype(bf16), p["a2_bo"].reshape(1, -1),
                               heads=heads)

    hs = fused_ff(hs.reshape(B * HW, inner),
                  p["ln3_g"].reshape(1, -1), p["ln3_b"].reshape(1, -1),
                  p["ff_w1"].astype(bf16), p["ff_b1"].reshape(1, -1),
                  p["ff_w2"].astype(bf16), p["ff_b2"].reshape(1, -1)
                  ).reshape(B, HW, inner)

    # proj_out (1x1 conv) + back to NCHW + residual, all inside one kernel
    out3 = proj_out_residual(hs, x3,
                             p["proj_out_w"].astype(bf16), p["proj_out_b"].reshape(-1, 1))
    return out3.reshape(B, C, H, W)


# ----------------------------- main -----------------------------

if __name__ == "__main__":
    B, C, H, W = 2, 32, 16, 16
    heads, dh = 2, 16
    inner = heads * dh            # 32
    cross_dim = 32
    enc_seq = 8
    ff_inner = 4 * inner          # 128

    key = jax.random.PRNGKey(0)
    keys = jax.random.split(key, 32)
    ki = iter(range(32))

    def nrm(shape, scale=0.02):
        return jax.random.normal(keys[next(ki)], shape, jnp.float32) * scale

    params = {
        "gn_g": 1.0 + nrm((C,), 0.1), "gn_b": nrm((C,), 0.1),
        # proj_in conv weight stored as (in_channels, inner) for channel-contraction
        "proj_in_w": nrm((C, inner)), "proj_in_b": nrm((inner,), 0.1),
        "ln1_g": 1.0 + nrm((inner,), 0.1), "ln1_b": nrm((inner,), 0.1),
        "ln2_g": 1.0 + nrm((inner,), 0.1), "ln2_b": nrm((inner,), 0.1),
        "ln3_g": 1.0 + nrm((inner,), 0.1), "ln3_b": nrm((inner,), 0.1),
        # linear weights stored (in, out)
        "a1_wq": nrm((inner, inner)), "a1_wk": nrm((inner, inner)),
        "a1_wv": nrm((inner, inner)),
        "a1_wo": nrm((inner, inner)), "a1_bo": nrm((inner,), 0.1),
        "a2_wq": nrm((inner, inner)), "a2_wk": nrm((cross_dim, inner)),
        "a2_wv": nrm((cross_dim, inner)),
        "a2_wo": nrm((inner, inner)), "a2_bo": nrm((inner,), 0.1),
        "ff_w1": nrm((inner, 2 * ff_inner)), "ff_b1": nrm((2 * ff_inner,), 0.1),
        "ff_w2": nrm((ff_inner, inner)), "ff_b2": nrm((inner,), 0.1),
        # proj_out conv weight kept in PyTorch (out_channels, in_channels) layout
        "proj_out_w": nrm((C, inner)), "proj_out_b": nrm((C,), 0.1),
    }

    x = jax.random.normal(keys[30], (B, C, H, W), jnp.float32)
    encoder_hidden_states = jax.random.normal(keys[31], (B, enc_seq, cross_dim), jnp.float32)

    out = transformer2d_forward(x, encoder_hidden_states, params, heads)
    out = jax.block_until_ready(out)

    assert out.shape == (B, C, H, W), out.shape
    assert bool(jnp.all(jnp.isfinite(out)))
    print("KERNEL_OK")
</pallas_src>

<mosaic_0001>
module attributes {stable_mosaic.version = 11 : i64} {
  func.func @_gn_proj_in_kernel(%arg0: i32, %arg1: memref<1x32x256xf32, #tpu.memory_space<vmem>>, %arg2: memref<32x1xf32, #tpu.memory_space<vmem>>, %arg3: memref<32x1xf32, #tpu.memory_space<vmem>>, %arg4: memref<32x32xbf16, #tpu.memory_space<vmem>>, %arg5: memref<1x32xf32, #tpu.memory_space<vmem>>, %arg6: memref<1x256x32xf32, #tpu.memory_space<vmem>>) attributes {dimension_semantics = [#tpu.dimension_semantics<parallel>], iteration_bounds = array<i64: 2>, scalar_prefetch = 0 : i64, scratch_operands = 0 : i64, tpu.core_type = #tpu.core_type<tc>, window_params = [{transform_indices = @transform_0, window_bounds = array<i64: 1, 32, 256>}, {pipeline_mode = #tpu.pipeline_mode<synchronous>, transform_indices = @transform_1, window_bounds = array<i64: 32, 1>}, {pipeline_mode = #tpu.pipeline_mode<synchronous>, transform_indices = @transform_2, window_bounds = array<i64: 32, 1>}, {pipeline_mode = #tpu.pipeline_mode<synchronous>, transform_indices = @transform_3, window_bounds = array<i64: 32, 32>}, {pipeline_mode = #tpu.pipeline_mode<synchronous>, transform_indices = @transform_4, window_bounds = array<i64: 1, 32>}, {transform_indices = @transform_5, window_bounds = array<i64: 1, 256, 32>}]} {
    %c0 = arith.constant 0 : index
    %c0_0 = arith.constant 0 : index
    %c0_1 = arith.constant 0 : index
    %0 = vector.load %arg1[%c0, %c0_0, %c0_1] : memref<1x32x256xf32, #tpu.memory_space<vmem>>, vector<1x32x256xf32>
    %1 = vector.shape_cast %0 : vector<1x32x256xf32> to vector<32x256xf32>
    %cst = arith.constant dense<0.000000e+00> : vector<32xf32>
    %2 = vector.multi_reduction <add>, %1, %cst [1] : vector<32x256xf32> to vector<32xf32>
    %3 = vector.shape_cast %2 : vector<32xf32> to vector<32x1xf32>
    %cst_2 = arith.constant 2.560000e+02 : f32
    %4 = vector.broadcast %cst_2 : f32 to vector<32x1xf32>
    %5 = arith.divf %3, %4 : vector<32x1xf32>
    %6 = vector.broadcast %5 : vector<32x1xf32> to vector<32x256xf32>
    %7 = arith.subf %1, %6 : vector<32x256xf32>
    %8 = arith.mulf %7, %7 : vector<32x256xf32>
    %cst_3 = arith.constant dense<0.000000e+00> : vector<32xf32>
    %9 = vector.multi_reduction <add>, %8, %cst_3 [1] : vector<32x256xf32> to vector<32xf32>
    %10 = vector.shape_cast %9 : vector<32xf32> to vector<32x1xf32>
    %cst_4 = arith.constant 2.560000e+02 : f32
    %11 = vector.broadcast %cst_4 : f32 to vector<32x1xf32>
    %12 = arith.divf %10, %11 : vector<32x1xf32>
    %13 = vector.broadcast %5 : vector<32x1xf32> to vector<32x256xf32>
    %14 = arith.subf %1, %13 : vector<32x256xf32>
    %cst_5 = arith.constant 9.99999997E-7 : f32
    %15 = vector.broadcast %cst_5 : f32 to vector<32x1xf32>
    %16 = arith.addf %12, %15 : vector<32x1xf32>
    %17 = math.rsqrt %16 : vector<32x1xf32>
    %18 = vector.broadcast %17 : vector<32x1xf32> to vector<32x256xf32>
    %19 = arith.mulf %14, %18 : vector<32x256xf32>
    %c0_6 = arith.constant 0 : index
    %c0_7 = arith.constant 0 : index
    %20 = vector.load %arg2[%c0_6, %c0_7] : memref<32x1xf32, #tpu.memory_space<vmem>>, vector<32x1xf32>
    %21 = vector.broadcast %20 : vector<32x1xf32> to vector<32x256xf32>
    %22 = arith.mulf %19, %21 : vector<32x256xf32>
    %c0_8 = arith.constant 0 : index
    %c0_9 = arith.constant 0 : index
    %23 = vector.load %arg3[%c0_8, %c0_9] : memref<32x1xf32, #tpu.memory_space<vmem>>, vector<32x1xf32>
    %24 = vector.broadcast %23 : vector<32x1xf32> to vector<32x256xf32>
    %25 = arith.addf %22, %24 : vector<32x256xf32>
    %26 = arith.truncf %25 : vector<32x256xf32> to vector<32x256xbf16>
    %c0_10 = arith.constant 0 : index
    %c0_11 = arith.constant 0 : index
    %27 = vector.load %arg4[%c0_10, %c0_11] : memref<32x32xbf16, #tpu.memory_space<vmem>>, vector<32x32xbf16>
    %cst_12 = arith.constant dense<0.000000e+00> : vector<256x32xf32>
    %28 = tpu.matmul %26, %27, %cst_12 {dimension_numbers = #tpu.dot_dimension_numbers<[0], [0], [1], [1], [0, 1, 1, 1], [], []>} : vector<32x256xbf16>, vector<32x32xbf16>, vector<256x32xf32> -> vector<256x32xf32>
    %c0_13 = arith.constant 0 : index
    %c0_14 = arith.constant 0 : index
    %29 = vector.load %arg5[%c0_13, %c0_14] : memref<1x32xf32, #tpu.memory_space<vmem>>, vector<1x32xf32>
    %30 = vector.broadcast %29 : vector<1x32xf32> to vector<256x32xf32>
    %31 = arith.addf %28, %30 : vector<256x32xf32>
    %c0_15 = arith.constant 0 : index
    %c0_16 = arith.constant 0 : index
    %c0_17 = arith.constant 0 : index
    %32 = vector.load %arg6[%c0_15, %c0_16, %c0_17] : memref<1x256x32xf32, #tpu.memory_space<vmem>>, vector<1x256x32xf32>
    %33 = vector.shape_cast %32 : vector<1x256x32xf32> to vector<256x32xf32>
    %34 = vector.shape_cast %31 : vector<256x32xf32> to vector<1x256x32xf32>
    tpu.vector_store %arg6[%c0_15, %c0_16, %c0_17], %34 {strides = array<i32>} : memref<1x256x32xf32, #tpu.memory_space<vmem>>, vector<1x256x32xf32>,
    return
  }
  func.func @transform_0(%arg0: i32) -> (i32, i32, i32) {
    %c0_i32 = arith.constant 0 : i32
    %c0_i32_0 = arith.constant 0 : i32
    %c0_i32_1 = arith.constant 0 : i32
    return %arg0, %c0_i32, %c0_i32_0 : i32, i32, i32
  }
  func.func @transform_1(%arg0: i32) -> (i32, i32) {
    %c0_i32 = arith.constant 0 : i32
    %c0_i32_0 = arith.constant 0 : i32
    %c0_i32_1 = arith.constant 0 : i32
    return %c0_i32, %c0_i32_0 : i32, i32
  }
  func.func @transform_2(%arg0: i32) -> (i32, i32) {
    %c0_i32 = arith.constant 0 : i32
    %c0_i32_0 = arith.constant 0 : i32
    %c0_i32_1 = arith.constant 0 : i32
    return %c0_i32, %c0_i32_0 : i32, i32
  }
  func.func @transform_3(%arg0: i32) -> (i32, i32) {
    %c0_i32 = arith.constant 0 : i32
    %c0_i32_0 = arith.constant 0 : i32
    %c0_i32_1 = arith.constant 0 : i32
    return %c0_i32, %c0_i32_0 : i32, i32
  }
  func.func @transform_4(%arg0: i32) -> (i32, i32) {
    %c0_i32 = arith.constant 0 : i32
    %c0_i32_0 = arith.constant 0 : i32
    %c0_i32_1 = arith.constant 0 : i32
    return %c0_i32, %c0_i32_0 : i32, i32
  }
  func.func @transform_5(%arg0: i32) -> (i32, i32, i32) {
    %c0_i32 = arith.constant 0 : i32
    %c0_i32_0 = arith.constant 0 : i32
    %c0_i32_1 = arith.constant 0 : i32
    return %arg0, %c0_i32, %c0_i32_0 : i32, i32, i32
  }
}

</mosaic_0001>

<llo_original>
// kernel: tpu_custom_call.1
$region0: #{tpu_custom_call.1}
  #allocation0 [shape = 'u32[]', space=smem, size = 0x4, offset = 0x4, fixed_abs, tag = 'smem constant byte address 0x4 - core index']
  #allocation1 [shape = 'u32[72,128]{1,0:T(1,128)}', space=vmem, size = 0x9000, scoped, tag = 'internal scratch']
  %s0 = inlined_call_operand.hbm [shape: f32[2,32,256], index: 0, kind: input, shape index: {}]
  %s1 = inlined_call_operand.vmem [shape: f32[32,1], index: 1, kind: input, shape index: {}]
  %s2 = inlined_call_operand.vmem [shape: f32[32,1], index: 2, kind: input, shape index: {}]
  %s3 = inlined_call_operand.vmem [shape: bf16[32,32], index: 3, kind: input, shape index: {}]
  %s4 = inlined_call_operand.vmem [shape: f32[1,32], index: 4, kind: input, shape index: {}]
  %s5 = inlined_call_operand.vmem [shape: f32[2,256,32], index: 5, kind: output, shape index: {}]
  %s6 = sld [smem:[#allocation0]]
  $region57: #{tpu_custom_call.1} parent=0
    _
  %s8 = ssub.s32 1, %s6
  %s9 = scalar_select 0, %s8, %s6
  $region1: #{tpu_custom_call.1} parent=0
    #allocation2 [shape = 'u8[65536]{0}', space=vmem, size = 0x10000, scoped, tag = 'input window, operand 0']
    #allocation3 [shape = 's32[2]{0}', space=sflag, size = 0x8, scoped, tag = 'scoped memory for tpu_custom_call.1']
    %10 = vsyncpa [#allocation3], 0
    %s11 = scalar_lea.sflag [#allocation3], 1
    %12 = vsyncpa %s11, 0
    loop: start=0, step=1, limit=4
    $region2: #{tpu_custom_call.1} parent=1 // loop_pre_header
      _
    $region3: #{tpu_custom_call.1} parent=1 // loop_header
      %s14 = sphi 0, %s18
      %p15 = scmp.ge.s32.totalorder %s14, 4
      %s24 = sphi 0, %s26
      %s27 = sphi 0, %s24
      %s28 = sphi 0, %s27
      %s44 = sphi 0, %s28
      %s48 = sphi 0, %s48
      %s50 = sphi 0, %s48
      %s51 = sphi 0, %s50
      %s65 = sphi 0, %s51
      %s69 = sphi 0, %s69
      %s71 = sphi 0, %s69
      %s72 = sphi 0, %s71
      %s86 = sphi 0, %s72
      %s90 = sphi 0, %s90
      %s92 = sphi 0, %s90
      %s93 = sphi 0, %s92
      %s107 = sphi 0, %s93
      %s111 = sphi 0, %s111
      %s113 = sphi 0, %s111
      %s114 = sphi 0, %s113
      %s128 = sphi 0, %s114
      %s134 = sphi 0, %s136
      %s137 = sphi 0, %s134
      %s138 = sphi 0, %s137
      %s154 = sphi 0, %s138
    $region4: #{tpu_custom_call.1} parent=1 // loop_header_branch
      %17 = sbr.rel (%p15) target = $region8
    $region5: #{tpu_custom_call.1} parent=1 // loop_body
      %s19 = ssub.s32 %s14, 1
      %s20 = ssub.s32 %s14, 2
      %s21 = sadd.s32 %s14, 1
      %s22 = ssub.s32 %s14, %s21
      %p23 = scmp.eq.s32.totalorder %s22, 0
      %s25 = sadd.s32 %s24, 1
      %s26 = scalar_select %p23, %s24, %s25
      %p29 = pneg %p23
      %p30 = scmp.eq.s32.totalorder %s14, 1
      %p31 = por %p29, %p30
      %p32 = scmp.ne.s32.totalorder %s24, %s27
      %p33 = scmp.eq.s32.totalorder %s14, 0
      %p34 = por %p32, %p33
      %p35 = scmp.ne.s32.totalorder %s24, %s27
      %p36 = scmp.eq.s32.totalorder %s19, 1
      %p37 = por %p35, %p36
      %p38 = scmp.ne.s32.totalorder %s27, %s28
      %p39 = scmp.eq.s32.totalorder %s19, 0
      %p40 = por %p38, %p39
      %p41 = scmp.ne.s32.totalorder %s27, %s28
      %p42 = scmp.eq.s32.totalorder %s20, 1
      %p43 = por %p41, %p42
      %p45 = scmp.ne.s32.totalorder %s28, %s44
      %p46 = scmp.eq.s32.totalorder %s20, 0
      %p47 = por %p45, %p46
      %s49 = sadd.s32 %s48, 1
      %p52 = scmp.eq.s32.totalorder %s14, 1
      %p53 = scmp.ne.s32.totalorder %s48, %s50
      %p54 = scmp.eq.s32.totalorder %s14, 0
      %p55 = por %p53, %p54
      %p56 = scmp.ne.s32.totalorder %s48, %s50
      %p57 = scmp.eq.s32.totalorder %s19, 1
      %p58 = por %p56, %p57
      %p59 = scmp.ne.s32.totalorder %s50, %s51
      %p60 = scmp.eq.s32.totalorder %s19, 0
      %p61 = por %p59, %p60
      %p62 = scmp.ne.s32.totalorder %s50, %s51
      %p63 = scmp.eq.s32.totalorder %s20, 1
      %p64 = por %p62, %p63
      %p66 = scmp.ne.s32.totalorder %s51, %s65
      %p67 = scmp.eq.s32.totalorder %s20, 0
      %p68 = por %p66, %p67
      %s70 = sadd.s32 %s69, 1
      %p73 = scmp.eq.s32.totalorder %s14, 1
      %p74 = scmp.ne.s32.totalorder %s69, %s71
      %p75 = scmp.eq.s32.totalorder %s14, 0
      %p76 = por %p74, %p75
      %p77 = scmp.ne.s32.totalorder %s69, %s71
      %p78 = scmp.eq.s32.totalorder %s19, 1
      %p79 = por %p77, %p78
      %p80 = scmp.ne.s32.totalorder %s71, %s72
      %p81 = scmp.eq.s32.totalorder %s19, 0
      %p82 = por %p80, %p81
      %p83 = scmp.ne.s32.totalorder %s71, %s72
      %p84 = scmp.eq.s32.totalorder %s20, 1
      %p85 = por %p83, %p84
      %p87 = scmp.ne.s32.totalorder %s72, %s86
      %p88 = scmp.eq.s32.totalorder %s20, 0
      %p89 = por %p87, %p88
      %s91 = sadd.s32 %s90, 1
      %p94 = scmp.eq.s32.totalorder %s14, 1
      %p95 = scmp.ne.s32.totalorder %s90, %s92
      %p96 = scmp.eq.s32.totalorder %s14, 0
      %p97 = por %p95, %p96
      %p98 = scmp.ne.s32.totalorder %s90, %s92
      %p99 = scmp.eq.s32.totalorder %s19, 1
      %p100 = por %p98, %p99
      %p101 = scmp.ne.s32.totalorder %s92, %s93
      %p102 = scmp.eq.s32.totalorder %s19, 0
      %p103 = por %p101, %p102
      %p104 = scmp.ne.s32.totalorder %s92, %s93
      %p105 = scmp.eq.s32.totalorder %s20, 1
      %p106 = por %p104, %p105
      %p108 = scmp.ne.s32.totalorder %s93, %s107
      %p109 = scmp.eq.s32.totalorder %s20, 0
      %p110 = por %p108, %p109
      %s112 = sadd.s32 %s111, 1
      %p115 = scmp.eq.s32.totalorder %s14, 1
      %p116 = scmp.ne.s32.totalorder %s111, %s113
      %p117 = scmp.eq.s32.totalorder %s14, 0
      %p118 = por %p116, %p117
      %p119 = scmp.ne.s32.totalorder %s111, %s113
      %p120 = scmp.eq.s32.totalorder %s19, 1
      %p121 = por %p119, %p120
      %p122 = scmp.ne.s32.totalorder %s113, %s114
      %p123 = scmp.eq.s32.totalorder %s19, 0
      %p124 = por %p122, %p123
      %p125 = scmp.ne.s32.totalorder %s113, %s114
      %p126 = scmp.eq.s32.totalorder %s20, 1
      %p127 = por %p125, %p126
      %p129 = scmp.ne.s32.totalorder %s114, %s128
      %p130 = scmp.eq.s32.totalorder %s20, 0
      %p131 = por %p129, %p130
      %s132 = ssub.s32 %s14, %s21
      %p133 = scmp.eq.s32.totalorder %s132, 0
      %s135 = sadd.s32 %s134, 1
      %s136 = scalar_select %p133, %s134, %s135
      %p139 = pneg %p133
      %p140 = scmp.eq.s32.totalorder %s14, 1
      %p141 = por %p139, %p140
      %p142 = scmp.ne.s32.totalorder %s134, %s137
      %p143 = scmp.eq.s32.totalorder %s14, 0
      %p144 = por %p142, %p143
      %p145 = scmp.ne.s32.totalorder %s134, %s137
      %p146 = scmp.eq.s32.totalorder %s19, 1
      %p147 = por %p145, %p146
      %p148 = scmp.ne.s32.totalorder %s137, %s138
      %p149 = scmp.eq.s32.totalorder %s19, 0
      %p150 = por %p148, %p149
      %p151 = scmp.ne.s32.totalorder %s137, %s138
      %p152 = scmp.eq.s32.totalorder %s20, 1
      %p153 = por %p151, %p152
      %p155 = scmp.ne.s32.totalorder %s138, %s154
      %p156 = scmp.eq.s32.totalorder %s20, 0
      %p157 = por %p155, %p156
      %p158 = scmp.le.s32.totalorder 1, %s14
      %p159 = scmp.lt.s32.totalorder %s14, 3
      %p160 = pnand %p158, %p159
      %p161 = pneg %p160
      // Predicated region
      $region9: #{tpu_custom_call.1} parent=5 // pred_check
        _
      $region10: #{tpu_custom_call.1} parent=5 // pred_check_branch
        %163 = sbr.rel (%p160) target = $region12
      $region11: #{tpu_custom_call.1} parent=5 // pred_region
        %s164 = ssub.s32 %s14, 1
        // Predicated region
        $region13: #{tpu_custom_call.1} parent=11 // pred_check
          %p165 = pneg %p61
        $region14: #{tpu_custom_call.1} parent=11 // pred_check_branch
          %167 = sbr.rel (%p165) target = $region16
        $region15: #{tpu_custom_call.1} parent=11 // pred_region
          _
        $region16: #{tpu_custom_call.1} parent=11 // pred_fallthru
          _
        // Predicated region
        $region17: #{tpu_custom_call.1} parent=11 // pred_check
          %p168 = pneg %p82
        $region18: #{tpu_custom_call.1} parent=11 // pred_check_branch
          %170 = sbr.rel (%p168) target = $region20
        $region19: #{tpu_custom_call.1} parent=11 // pred_region
          _
        $region20: #{tpu_custom_call.1} parent=11 // pred_fallthru
          _
        // Predicated region
        $region21: #{tpu_custom_call.1} parent=11 // pred_check
          %p171 = pneg %p103
        $region22: #{tpu_custom_call.1} parent=11 // pred_check_branch
          %173 = sbr.rel (%p171) target = $region24
        $region23: #{tpu_custom_call.1} parent=11 // pred_region
          _
        $region24: #{tpu_custom_call.1} parent=11 // pred_fallthru
          _
        // Predicated region
        $region25: #{tpu_custom_call.1} parent=11 // pred_check
          %p174 = pneg %p124
        $region26: #{tpu_custom_call.1} parent=11 // pred_check_branch
          %176 = sbr.rel (%p174) target = $region28
        $region27: #{tpu_custom_call.1} parent=11 // pred_region
          _
        $region28: #{tpu_custom_call.1} parent=11 // pred_fallthru
          _
      $region12: #{tpu_custom_call.1} parent=5 // pred_fallthru
        _
      %p177 = scmp.lt.s32.totalorder %s14, 2
      // Predicated region
      $region29: #{tpu_custom_call.1} parent=5 // pred_check
        %p178 = pneg %p177
      $region30: #{tpu_custom_call.1} parent=5 // pred_check_branch
        %180 = sbr.rel (%p178) target = $region32
      $region31: #{tpu_custom_call.1} parent=5 // pred_region
        // Predicated region
        $region33: #{tpu_custom_call.1} parent=31 // pred_check
          %p181 = pneg %p34
        $region34: #{tpu_custom_call.1} parent=31 // pred_check_branch
          %183 = sbr.rel (%p181) target = $region36
        $region35: #{tpu_custom_call.1} parent=31 // pred_region
          %s184 = sand.u32 %s24, 1
          %s185 = scalar_lea.sflag [#allocation3], %s184
          %s186 = sand.u32 %s24, 1
          %s187 = smul.addr %s186, 64
          %s188 = scalar_lea.vmem [#allocation2], %s187
          %190 = vsyncadd %s185, 0
          %s191 = smul.addr %s14, 8
          %s192 = smul.addr %s191, 8
          %s193 = scalar_lea.hbm %s0, %s192
          %s194 = sshll.u32 %s193, 4
          %s195 = int_to_ptr.hbm [resolvable:$true] %s194
          %s196 = sshll.u32 %s188, 4
          %s197 = int_to_ptr.vmem [resolvable:$true] %s196
          %202 = dma.hbm_to_vmem [thread:$0]  %s195, 1024, %s197, %s185, 256, 256, 16
        $region36: #{tpu_custom_call.1} parent=31 // pred_fallthru
          _
      $region32: #{tpu_custom_call.1} parent=5 // pred_fallthru
        _
      %p203 = scmp.le.s32.totalorder 1, %s14
      %p204 = scmp.lt.s32.totalorder %s14, 3
      %p205 = pnand %p203, %p204
      %p206 = pneg %p205
      // Predicated region
      $region37: #{tpu_custom_call.1} parent=5 // pred_check
        _
      $region38: #{tpu_custom_call.1} parent=5 // pred_check_branch
        %208 = sbr.rel (%p205) target = $region40
      $region39: #{tpu_custom_call.1} parent=5 // pred_region
        %s209 = ssub.s32 %s14, 1
        %s210 = sand.u32 %s27, 1
        %s211 = scalar_lea.sflag [#allocation3], %s210
        %s212 = sand.u32 %s27, 1
        %s213 = smul.addr %s212, 64
        %s214 = scalar_lea.vmem [#allocation2], %s213
        // Predicated region
        $region41: #{tpu_custom_call.1} parent=39 // pred_check
          %p215 = pneg %p40
        $region42: #{tpu_custom_call.1} parent=39 // pred_check_branch
          %217 = sbr.rel (%p215) target = $region44
        $region43: #{tpu_custom_call.1} parent=39 // pred_region
          %219 = dma.done %s211, 1024
        $region44: #{tpu_custom_call.1} parent=39 // pred_fallthru
          _
        %s220 = sand.u32 %s27, 1
        %s221 = scalar_lea.sflag [#allocation3], %s220
        %s222 = sand.u32 %s27, 1
        %s223 = smul.addr %s222, 64
        %s224 = scalar_lea.vmem [#allocation2], %s223
        %p225 = pneg %p40
        %p226 = pneg %p37
        %p227 = pneg %p61
        %p228 = pneg %p58
        %p229 = pneg %p82
        %p230 = pneg %p79
        %p231 = pneg %p103
        %p232 = pneg %p100
        %p233 = pneg %p124
        %p234 = pneg %p121
        %p235 = pneg %p150
        %p236 = pneg %p147
        %p237 = scmp.lt.s32.totalorder %s19, 1
        %s238 = scalar_select %p237, %s19, 1
        %s239 = smul.addr %s238, 32
        %s240 = smul.addr %s239, 8
        %s241 = scalar_lea.vmem %s5, %s240
        %p242 = scmp.lt.s32.totalorder %s19, 1
        %s243 = scalar_select %p242, %s19, 1
        %s244 = smul.addr %s243, 32
        %s245 = smul.addr %s244, 8
        %s246 = scalar_lea.vmem %s5, %s245
        %v248 = vld [vmem:[%s214] sm:$0xff]
        %v249 = vld [vmem:[%s214 + $0x8] sm:$0xff]
        %v250 = vld [vmem:[%s214 + $0x10] sm:$0xff]
        %v251 = vld [vmem:[%s214 + $0x18] sm:$0xff]
        %v252 = vld [vmem:[%s214 + $0x20] sm:$0xff]
        %v253 = vld [vmem:[%s214 + $0x28] sm:$0xff]
        %v254 = vld [vmem:[%s214 + $0x30] sm:$0xff]
        %v255 = vld [vmem:[%s214 + $0x38] sm:$0xff]
        %v256 = vadd.f32 %v248, %v249
        %257 = vadd.xlane.f32.xlu0 %v256
        %v258 = vpop.xlane.xlu0 %257
        %v259 = vadd.f32 %v250, %v251
        %260 = vadd.xlane.f32.xlu0 %v259
        %v261 = vpop.xlane.xlu0 %260
        %v262 = vadd.f32 %v252, %v253
        %263 = vadd.xlane.f32.xlu0 %v262
        %v264 = vpop.xlane.xlu0 %263
        %v265 = vadd.f32 %v254, %v255
        %266 = vadd.xlane.f32.xlu0 %v265
        %v267 = vpop.xlane.xlu0 %266
        %v268 = vrcp.pop 256.0
        %v269 = vmul.f32 256.0, %v268
        %v270 = vsub.f32 1.0, %v269
        %v271 = vmul.f32 %v268, %v270
        %v272 = vadd.f32 %v268, %v271
        %vm273 = vweird.f32 %v268
        %v274 = vsel %vm273, %v268, %v272
        %v275 = vmul.f32 %v258, %v274
        %v276 = vmul.f32 %v261, %v274
        %v277 = vmul.f32 %v264, %v274
        %v278 = vmul.f32 %v267, %v274
        %v279 = vsub.f32 %v248, %v275
        %v280 = vsub.f32 %v249, %v275
        %v281 = vsub.f32 %v250, %v276
        %v282 = vsub.f32 %v251, %v276
        %v283 = vsub.f32 %v252, %v277
        %v284 = vsub.f32 %v253, %v277
        %v285 = vsub.f32 %v254, %v278
        %v286 = vsub.f32 %v255, %v278
        %v287 = vmul.f32 %v279, %v279
        %v288 = vmul.f32 %v280, %v280
        %v289 = vmul.f32 %v281, %v281
        %v290 = vmul.f32 %v282, %v282
        %v291 = vmul.f32 %v283, %v283
        %v292 = vmul.f32 %v284, %v284
        %v293 = vmul.f32 %v285, %v285
        %v294 = vmul.f32 %v286, %v286
        %v295 = vadd.f32 %v287, %v288
        %296 = vadd.xlane.f32.xlu0 %v295
        %v297 = vpop.xlane.xlu0 %296
        %v298 = vadd.f32 %v289, %v290
        %299 = vadd.xlane.f32.xlu0 %v298
        %v300 = vpop.xlane.xlu0 %299
        %v301 = vadd.f32 %v291, %v292
        %302 = vadd.xlane.f32.xlu0 %v301
        %v303 = vpop.xlane.xlu0 %302
        %v304 = vadd.f32 %v293, %v294
        %305 = vadd.xlane.f32.xlu0 %v304
        %v306 = vpop.xlane.xlu0 %305
        %v307 = vmul.f32 %v297, %v274
        %v308 = vmul.f32 %v300, %v274
        %v309 = vmul.f32 %v303, %v274
        %v310 = vmul.f32 %v306, %v274
        %v311 = vadd.f32 %v307, 1e-06
        %v312 = vadd.f32 %v308, 1e-06
        %v313 = vadd.f32 %v309, 1e-06
        %v314 = vadd.f32 %v310, 1e-06
        %v315 = vrsqrt.pop %v311
        %v316 = vmul.f32 %v315, %v311
        %v317 = vmul.f32 %v316, %v315
        %v318 = vmul.f32 0.5, %v317
        %v319 = vsub.f32 1.5, %v318
        %v320 = vmul.f32 %v315, %v319
        %vm321 = vweird.f32 %v311
        %vm322 = vweird.f32 %v315
        %vm323 = vmor %vm321, %vm322
        %v324 = vsel %vm323, %v315, %v320
        %v325 = vrsqrt.pop %v312
        %v326 = vmul.f32 %v325, %v312
        %v327 = vmul.f32 %v326, %v325
        %v328 = vmul.f32 0.5, %v327
        %v329 = vsub.f32 1.5, %v328
        %v330 = vmul.f32 %v325, %v329
        %vm331 = vweird.f32 %v312
        %vm332 = vweird.f32 %v325
        %vm333 = vmor %vm331, %vm332
        %v334 = vsel %vm333, %v325, %v330
        %v335 = vrsqrt.pop %v313
        %v336 = vmul.f32 %v335, %v313
        %v337 = vmul.f32 %v336, %v335
        %v338 = vmul.f32 0.5, %v337
        %v339 = vsub.f32 1.5, %v338
        %v340 = vmul.f32 %v335, %v339
        %vm341 = vweird.f32 %v313
        %vm342 = vweird.f32 %v335
        %vm343 = vmor %vm341, %vm342
        %v344 = vsel %vm343, %v335, %v340
        %v345 = vrsqrt.pop %v314
        %v346 = vmul.f32 %v345, %v314
        %v347 = vmul.f32 %v346, %v345
        %v348 = vmul.f32 0.5, %v347
        %v349 = vsub.f32 1.5, %v348
        %v350 = vmul.f32 %v345, %v349
        %vm351 = vweird.f32 %v314
        %vm352 = vweird.f32 %v345
        %vm353 = vmor %vm351, %vm352
        %v354 = vsel %vm353, %v345, %v350
        %v355 = vmul.f32 %v279, %v324
        %v356 = vmul.f32 %v280, %v324
        %v357 = vmul.f32 %v281, %v334
        %v358 = vmul.f32 %v282, %v334
        %v359 = vmul.f32 %v283, %v344
        %v360 = vmul.f32 %v284, %v344
        %v361 = vmul.f32 %v285, %v354
        %v362 = vmul.f32 %v286, %v354
        %v363 = vld [vmem:[%s1] sm:$0xff]
        %v364 = vld [vmem:[%s1 + $0x8] sm:$0xff]
        %v365 = vld [vmem:[%s1 + $0x10] sm:$0xff]
        %v366 = vld [vmem:[%s1 + $0x18] sm:$0xff]
        %368 = vset.pattern.permute.xlu0 0
        %369 = vperm.xlu0 %368, %v363
        %v370 = vpop.permute.xlu0 %369
        %373 = vset.pattern.permute.xlu0 0
        %374 = vperm.xlu0 %373, %v364
        %v375 = vpop.permute.xlu0 %374
        %378 = vset.pattern.permute.xlu0 0
        %379 = vperm.xlu0 %378, %v365
        %v380 = vpop.permute.xlu0 %379
        %383 = vset.pattern.permute.xlu0 0
        %384 = vperm.xlu0 %383, %v366
        %v385 = vpop.permute.xlu0 %384
        %v387 = vmul.f32 %v355, %v370
        %v388 = vmul.f32 %v356, %v370
        %v389 = vmul.f32 %v357, %v375
        %v390 = vmul.f32 %v358, %v375
        %v391 = vmul.f32 %v359, %v380
        %v392 = vmul.f32 %v360, %v380
        %v393 = vmul.f32 %v361, %v385
        %v394 = vmul.f32 %v362, %v385
        %v395 = vld [vmem:[%s2] sm:$0xff]
        %v396 = vld [vmem:[%s2 + $0x8] sm:$0xff]
        %v397 = vld [vmem:[%s2 + $0x10] sm:$0xff]
        %v398 = vld [vmem:[%s2 + $0x18] sm:$0xff]
        %400 = vset.pattern.permute.xlu0 0
        %401 = vperm.xlu0 %400, %v395
        %v402 = vpop.permute.xlu0 %401
        %405 = vset.pattern.permute.xlu0 0
        %406 = vperm.xlu0 %405, %v396
        %v407 = vpop.permute.xlu0 %406
        %410 = vset.pattern.permute.xlu0 0
        %411 = vperm.xlu0 %410, %v397
        %v412 = vpop.permute.xlu0 %411
        %415 = vset.pattern.permute.xlu0 0
        %416 = vperm.xlu0 %415, %v398
        %v417 = vpop.permute.xlu0 %416
        %v419 = vadd.f32 %v387, %v402
        %v420 = vadd.f32 %v388, %v402
        %v421 = vadd.f32 %v389, %v407
        %v422 = vadd.f32 %v390, %v407
        %v423 = vadd.f32 %v391, %v412
        %v424 = vadd.f32 %v392, %v412
        %v425 = vadd.f32 %v393, %v417
        %v426 = vadd.f32 %v394, %v417
        %v427 = vpack.c.bf16 %v421, %v419
        %v428 = vpack.c.bf16 %v422, %v420
        %v429 = vpack.c.bf16 %v425, %v423
        %v430 = vpack.c.bf16 %v426, %v424
        %v431 = vld [vmem:[%s3] sm:$0xf]
        %v432 = vld [vmem:[%s3 + $0x4] sm:$0xf]
        %v433 = vld [vmem:[%s3 + $0x8] sm:$0xf]
        %v434 = vld [vmem:[%s3 + $0xc] sm:$0xf]
        %v435 = vld [vmem:[%s4] sm:$0x1]
        %v437 = vperm.slane %v435, 0
        %439 = vxpose.binary.xlu0.c.b16.start [1/16] %v428, %v427, 128
        %440 = vxpose.binary.xlu0.c.b16.cont [2/16] %v430, %v429, 128
        %441 = vxpose.binary.xlu0.c.b16.cont [3/16] 0, 0, 128
        %442 = vxpose.binary.xlu0.c.b16.cont [4/16] 0, 0, 128
        %443 = vxpose.binary.xlu0.c.b16.cont [5/16] 0, 0, 128
        %444 = vxpose.binary.xlu0.c.b16.cont [6/16] 0, 0, 128
        %445 = vxpose.binary.xlu0.c.b16.cont [7/16] 0, 0, 128
        %446 = vxpose.binary.xlu0.c.b16.end [8/16] 0, 0, 128
        %v447 = vpop.trf.xlu0
        %v448 = vpop.trf.xlu0
        %v449 = vpop.trf.xlu0
        %v450 = vpop.trf.xlu0
        %v451 = vpop.trf.xlu0
        %v452 = vpop.trf.xlu0
        %v453 = vpop.trf.xlu0
        %v454 = vpop.trf.xlu0
        %v455 = vpop.trf.xlu0
        %v456 = vpop.trf.xlu0
        %v457 = vpop.trf.xlu0
        %v458 = vpop.trf.xlu0
        %v459 = vpop.trf.xlu0
        %v460 = vpop.trf.xlu0
        %v461 = vpop.trf.xlu0
        %v462 = vpop.trf.xlu0
        %v467 = vunpack.c.l.b16 %v431
        %v468 = vunpack.c.l.b16 %v432
        %v469 = vunpack.c.l.b16 %v433
        %v470 = vunpack.c.l.b16 %v434
        %v471 = vpack.c.b16 %v468, %v467
        %v472 = vpack.c.b16 %v470, %v469
        %vm475 = vcmask 261120
        %v477 = vsel %vm475, %v447, 0
        %v480 = vsel %vm475, %v449, 0
        %v483 = vsel %vm475, %v451, 0
        %v486 = vsel %vm475, %v453, 0
        %v489 = vsel %vm475, %v455, 0
        %v492 = vsel %vm475, %v457, 0
        %v495 = vsel %vm475, %v459, 0
        %v498 = vsel %vm475, %v461, 0
        %v501 = vsel %vm475, %v448, 0
        %v504 = vsel %vm475, %v450, 0
        %v507 = vsel %vm475, %v452, 0
        %v510 = vsel %vm475, %v454, 0
        %v513 = vsel %vm475, %v456, 0
        %v516 = vsel %vm475, %v458, 0
        %v519 = vsel %vm475, %v460, 0
        %v522 = vsel %vm475, %v462, 0
        %524 = vmatpush.bf16.msra.mxu0 0
        %525 = vmatpush.bf16.msra.mxu0 0
        %526 = vmatpush.bf16.msra.mxu0 0
        %527 = vmatpush.bf16.msra.mxu0 0
        %528 = vmatpush.bf16.msra.mxu0 0
        %529 = vmatpush.bf16.msra.mxu0 0
        %530 = vmatpush.bf16.msra.mxu0 %v472
        %531 = vmatpush.bf16.msra.mxu0 %v471
        %532 = vmatmul.bf16.gmra.mxu0 %v477
        %v533 = vpop.f32.mrf.mxu0
        %v534 = vadd.f32 %v437, %v533
        %v535 = vpop.f32.mrf.mxu0
        %v536 = vadd.f32 %v437, %v535
        %537 = vmatmul.bf16.gmra.mxu0 %v480
        %v538 = vpop.f32.mrf.mxu0
        %v539 = vadd.f32 %v437, %v538
        %v540 = vpop.f32.mrf.mxu0
        %v541 = vadd.f32 %v437, %v540
        %542 = vmatmul.bf16.gmra.mxu0 %v483
        %v543 = vpop.f32.mrf.mxu0
        %v544 = vadd.f32 %v437, %v543
        %v545 = vpop.f32.mrf.mxu0
        %v546 = vadd.f32 %v437, %v545
        %547 = vmatmul.bf16.gmra.mxu0 %v486
        %v548 = vpop.f32.mrf.mxu0
        %v549 = vadd.f32 %v437, %v548
        %v550 = vpop.f32.mrf.mxu0
        %v551 = vadd.f32 %v437, %v550
        %552 = vmatmul.bf16.gmra.mxu0 %v489
        %v553 = vpop.f32.mrf.mxu0
        %v554 = vadd.f32 %v437, %v553
        %v555 = vpop.f32.mrf.mxu0
        %v556 = vadd.f32 %v437, %v555
        %557 = vmatmul.bf16.gmra.mxu0 %v492
        %v558 = vpop.f32.mrf.mxu0
        %v559 = vadd.f32 %v437, %v558
        %v560 = vpop.f32.mrf.mxu0
        %v561 = vadd.f32 %v437, %v560
        %562 = vmatmul.bf16.gmra.mxu0 %v495
        %v563 = vpop.f32.mrf.mxu0
        %v564 = vadd.f32 %v437, %v563
        %v565 = vpop.f32.mrf.mxu0
        %v566 = vadd.f32 %v437, %v565
        %567 = vmatmul.bf16.gmra.mxu0 %v498
        %v568 = vpop.f32.mrf.mxu0
        %v569 = vadd.f32 %v437, %v568
        %v570 = vpop.f32.mrf.mxu0
        %v571 = vadd.f32 %v437, %v570
        %572 = vmatmul.bf16.gmra.mxu0 %v501
        %v573 = vpop.f32.mrf.mxu0
        %v574 = vadd.f32 %v437, %v573
        %v575 = vpop.f32.mrf.mxu0
        %v576 = vadd.f32 %v437, %v575
        %577 = vmatmul.bf16.gmra.mxu0 %v504
        %v578 = vpop.f32.mrf.mxu0
        %v579 = vadd.f32 %v437, %v578
        %v580 = vpop.f32.mrf.mxu0
        %v581 = vadd.f32 %v437, %v580
        %582 = vmatmul.bf16.gmra.mxu0 %v507
        %v583 = vpop.f32.mrf.mxu0
        %v584 = vadd.f32 %v437, %v583
        %v585 = vpop.f32.mrf.mxu0
        %v586 = vadd.f32 %v437, %v585
        %587 = vmatmul.bf16.gmra.mxu0 %v510
        %v588 = vpop.f32.mrf.mxu0
        %v589 = vadd.f32 %v437, %v588
        %v590 = vpop.f32.mrf.mxu0
        %v591 = vadd.f32 %v437, %v590
        %592 = vmatmul.bf16.gmra.mxu0 %v513
        %v593 = vpop.f32.mrf.mxu0
        %v594 = vadd.f32 %v437, %v593
        %v595 = vpop.f32.mrf.mxu0
        %v596 = vadd.f32 %v437, %v595
        %597 = vmatmul.bf16.gmra.mxu0 %v516
        %v598 = vpop.f32.mrf.mxu0
        %v599 = vadd.f32 %v437, %v598
        %v600 = vpop.f32.mrf.mxu0
        %v601 = vadd.f32 %v437, %v600
        %602 = vmatmul.bf16.gmra.mxu0 %v519
        %v603 = vpop.f32.mrf.mxu0
        %v604 = vadd.f32 %v437, %v603
        %v605 = vpop.f32.mrf.mxu0
        %v606 = vadd.f32 %v437, %v605
        %607 = vmatmul.bf16.gmra.mxu0 %v522
        %v608 = vpop.f32.mrf.mxu0
        %v609 = vadd.f32 %v437, %v608
        %v610 = vpop.f32.mrf.mxu0
        %v611 = vadd.f32 %v437, %v610
        %612 = vdwg.mxu0
        %613 = vst.msk [vmem:[%s246] sm:$0xff] %vm475, %v534
        %614 = vst.msk [vmem:[%s246 + $0x8] sm:$0xff] %vm475, %v536
        %615 = vst.msk [vmem:[%s246 + $0x10] sm:$0xff] %vm475, %v539
        %616 = vst.msk [vmem:[%s246 + $0x18] sm:$0xff] %vm475, %v541
        %617 = vst.msk [vmem:[%s246 + $0x20] sm:$0xff] %vm475, %v544
        %618 = vst.msk [vmem:[%s246 + $0x28] sm:$0xff] %vm475, %v546
        %619 = vst.msk [vmem:[%s246 + $0x30] sm:$0xff] %vm475, %v549
        %620 = vst.msk [vmem:[%s246 + $0x38] sm:$0xff] %vm475, %v551
        %621 = vst.msk [vmem:[%s246 + $0x40] sm:$0xff] %vm475, %v554
        %622 = vst.msk [vmem:[%s246 + $0x48] sm:$0xff] %vm475, %v556
        %623 = vst.msk [vmem:[%s246 + $0x50] sm:$0xff] %vm475, %v559
        %624 = vst.msk [vmem:[%s246 + $0x58] sm:$0xff] %vm475, %v561
        %625 = vst.msk [vmem:[%s246 + $0x60] sm:$0xff] %vm475, %v564
        %626 = vst.msk [vmem:[%s246 + $0x68] sm:$0xff] %vm475, %v566
        %627 = vst.msk [vmem:[%s246 + $0x70] sm:$0xff] %vm475, %v569
        %628 = vst.msk [vmem:[%s246 + $0x78] sm:$0xff] %vm475, %v571
        %629 = vst.msk [vmem:[%s246 + $0x80] sm:$0xff] %vm475, %v574
        %630 = vst.msk [vmem:[%s246 + $0x88] sm:$0xff] %vm475, %v576
        %631 = vst.msk [vmem:[%s246 + $0x90] sm:$0xff] %vm475, %v579
        %632 = vst.msk [vmem:[%s246 + $0x98] sm:$0xff] %vm475, %v581
        %633 = vst.msk [vmem:[%s246 + $0xa0] sm:$0xff] %vm475, %v584
        %634 = vst.msk [vmem:[%s246 + $0xa8] sm:$0xff] %vm475, %v586
        %635 = vst.msk [vmem:[%s246 + $0xb0] sm:$0xff] %vm475, %v589
        %636 = vst.msk [vmem:[%s246 + $0xb8] sm:$0xff] %vm475, %v591
        %637 = vst.msk [vmem:[%s246 + $0xc0] sm:$0xff] %vm475, %v594
        %638 = vst.msk [vmem:[%s246 + $0xc8] sm:$0xff] %vm475, %v596
        %639 = vst.msk [vmem:[%s246 + $0xd0] sm:$0xff] %vm475, %v599
        %640 = vst.msk [vmem:[%s246 + $0xd8] sm:$0xff] %vm475, %v601
        %641 = vst.msk [vmem:[%s246 + $0xe0] sm:$0xff] %vm475, %v604
        %642 = vst.msk [vmem:[%s246 + $0xe8] sm:$0xff] %vm475, %v606
        %643 = vst.msk [vmem:[%s246 + $0xf0] sm:$0xff] %vm475, %v609
        %644 = vst.msk [vmem:[%s246 + $0xf8] sm:$0xff] %vm475, %v611
        %p645 = scmp.lt.s32.totalorder %s19, 1
        %s646 = scalar_select %p645, %s19, 1
        %s647 = smul.addr %s646, 32
        %s648 = smul.addr %s647, 8
        %s649 = scalar_lea.vmem %s5, %s648
        // Predicated region
        $region45: #{tpu_custom_call.1} parent=39 // pred_check
          %p650 = pneg %p147
        $region46: #{tpu_custom_call.1} parent=39 // pred_check_branch
          %652 = sbr.rel (%p650) target = $region48
        $region47: #{tpu_custom_call.1} parent=39 // pred_region
          _
        $region48: #{tpu_custom_call.1} parent=39 // pred_fallthru
          _
      $region40: #{tpu_custom_call.1} parent=5 // pred_fallthru
        _
      %p653 = scmp.le.s32.totalorder 2, %s14
      // Predicated region
      $region49: #{tpu_custom_call.1} parent=5 // pred_check
        %p654 = pneg %p653
      $region50: #{tpu_custom_call.1} parent=5 // pred_check_branch
        %656 = sbr.rel (%p654) target = $region52
      $region51: #{tpu_custom_call.1} parent=5 // pred_region
        %s657 = ssub.s32 %s14, 2
        // Predicated region
        $region53: #{tpu_custom_call.1} parent=51 // pred_check
          %p658 = pneg %p153
        $region54: #{tpu_custom_call.1} parent=51 // pred_check_branch
          %660 = sbr.rel (%p658) target = $region56
        $region55: #{tpu_custom_call.1} parent=51 // pred_region
          %p661 = scmp.lt.s32.totalorder %s20, 1
          %s662 = scalar_select %p661, %s20, 1
          %s663 = smul.addr %s662, 32
          %s664 = smul.addr %s663, 8
          %s665 = scalar_lea.vmem %s5, %s664
        $region56: #{tpu_custom_call.1} parent=51 // pred_fallthru
          _
      $region52: #{tpu_custom_call.1} parent=5 // pred_fallthru
        _
    $region6: #{tpu_custom_call.1} parent=1 // loop_footer
      %s18 = sadd.s32 1, %s14
    $region7: #{tpu_custom_call.1} parent=1 // loop_footer_branch
      %13 = sbr.rel target = $region3
    $region8: #{tpu_custom_call.1} parent=1 // loop_exit
      _
    %666 = vsyncpa [#allocation3], 1
    %s667 = scalar_lea.sflag [#allocation3], 1
    %668 = vsyncpa %s667, 1

</llo_original>
